<compile_context>
chip_gen: v6e
topology: v6e:2x2x1
jax: 0.10.0
libtpu: 0.0.40
codegen_flags: <defaults>
</compile_context>

<pallas_src>
import functools

import jax
import jax.numpy as jnp
from jax.experimental import pallas as pl
from jax.experimental.pallas import tpu as pltpu


def _round_up(x, m):
    return ((x + m - 1) // m) * m


def _cdiv(a, b):
    return -(-a // b)


def _vmem_capacity_bytes():
    """Physical VMEM of the attached TPU (64 MiB v7x, 128 MiB v5e/v6e).
    Conservative 64 MiB fallback if the query is unavailable."""
    try:
        info = pltpu.get_tpu_info()
        for name in ("vmem_capacity_bytes", "vmem_bytes", "vmem_size_bytes",
                     "vmem_capacity"):
            v = getattr(info, name, None)
            if v:
                return int(v)
    except Exception:
        pass
    return 64 * 1024 * 1024


_PHYS_VMEM = _vmem_capacity_bytes()
# Per-grid-step working-set budget (~25 MiB on v7x, ~51 MiB on v5e/v6e) and the
# scoped-VMEM limit handed to Mosaic (~48 MiB / ~96 MiB, leaving headroom).
_VMEM_BUDGET = int(_PHYS_VMEM * 0.40)
_VMEM_LIMIT = int(_PHYS_VMEM * 0.75)


def _choose_tiles(B, S, F, A_pad, dec_hid, enc_bytes):
    """Pick (BT, num_bt, ST, num_st, S_pad).

    * src_len: one step for short sequences, 512-wide (128-multiple) tiles
      otherwise, so VMEM is bounded by the tile (mandatory on v7x's 64 MiB for
      long src_len) and the pipeline has enough steps to hide the enc DMA.
    * batch: tiles are multiples of the sublane pack (8 for f32, 16 for bf16,
      so the in-kernel [ST,BT,F] -> [ST*BT,F] merge is a layout no-op), at
      least 2 tiles (v7x: shard the 'parallel' axis across 2 TensorCores), and
      as large as the generation-aware VMEM budget allows.
    """
    ST = S if S <= 512 else 512
    num_st = _cdiv(S, ST)
    S_pad = _round_up(num_st * ST, 128)          # lane-dense output width

    def step_bytes(bt):
        enc = 2 * ST * bt * F * enc_bytes                     # double-buffered enc block
        out = 2 * bt * S_pad * 4                              # double-buffered out block
        dec = 2 * bt * dec_hid * 4
        wgt = 2 * (dec_hid + F + 1) * A_pad * 4               # resident weights + bias
        mid = 3 * ST * bt * A_pad * 4                         # proj + tanh energy + slack
        scr = bt * A_pad * 4                                  # decoder-projection scratch
        scr += num_st * ST * bt * 4 if num_st > 1 else 0      # per-tile scores scratch
        fin = 2 * bt * S_pad * 4                              # finalize concat/transpose
        return enc + out + dec + wgt + mid + scr + fin

    align = 8 if enc_bytes >= 4 else 16
    b2 = _round_up(B, 2 * align)
    bt = max(min(b2 // 2, 1024), align)          # >= 2 batch tiles, capped
    while bt > align and step_bytes(bt) > _VMEM_BUDGET:
        bt -= align
    num_bt = max(_cdiv(b2, bt), 2)
    return bt, num_bt, ST, num_st, S_pad


def _attention_kernel(s_len, num_st, dec_ref, enc_ref, wd_ref, we_ref, b_ref,
                      out_ref, db_ref, *scores_scratch):
    # dec_ref: [BT, dec_hid]        enc_ref: [ST, BT, F]  (native [S,B,F] layout)
    # wd_ref : [dec_hid, A_pad]     we_ref : [F, A_pad]   b_ref: [1, A_pad]
    # out_ref: [BT, S_pad]          db_ref : [BT, A_pad]  (decoder proj scratch)
    # scores_scratch (only when num_st > 1): [num_st, ST, BT]
    j = pl.program_id(1)
    ST, BT, F = enc_ref.shape
    A_pad = we_ref.shape[1]
    S_pad = out_ref.shape[-1]
    S_grid = num_st * ST

    # Decoder projection + bias: one tiny MXU matmul per batch tile, kept
    # resident in VMEM and reused across all src_len tiles.
    @pl.when(j == 0)
    def _():
        db_ref[...] = (
            jnp.dot(dec_ref[...], wd_ref[...], preferred_element_type=jnp.float32)
            + b_ref[...])

    # Encoder projection: all ST*BT rows of the tile in ONE MXU matmul.  BT is a
    # multiple of the sublane pack, so the leading-dim merge / split back are
    # layout no-ops (no VMEM relayout on the critical path).
    enc_proj = jnp.dot(enc_ref[...].reshape(ST * BT, F), we_ref[...],
                       preferred_element_type=jnp.float32)
    # energy = tanh(enc_proj + dec_proj + bias); zero-padded attn lanes stay 0,
    # so the feature sum below is exact.
    energy = jnp.tanh(enc_proj.reshape(ST, BT, A_pad) + db_ref[...][None, :, :])
    scores_sb = jnp.sum(energy, axis=-1)                      # [ST, BT]

    if num_st > 1:
        scores_scratch[0][j] = scores_sb                      # stash this src tile

    # Last src_len tile: assemble the full row, mask padding, softmax, store the
    # lane-dense [BT, S_pad] output block in one shot.
    @pl.when(j == num_st - 1)
    def _():
        if num_st > 1:
            parts = [scores_scratch[0][t] for t in range(num_st - 1)] + [scores_sb]
        else:
            parts = [scores_sb]
        if S_pad > S_grid:
            parts.append(jnp.full((S_pad - S_grid, BT), -1e30, jnp.float32))
        s_sb = parts[0] if len(parts) == 1 else jnp.concatenate(parts, axis=0)
        scores = s_sb.T                                       # [BT, S_pad], lane-dense
        col = jax.lax.broadcasted_iota(jnp.int32, (BT, S_pad), 1)
        scores = jnp.where(col < s_len, scores, -1e30)        # free VPU select

        m = jnp.max(scores, axis=-1, keepdims=True)
        e = jnp.exp(scores - m)
        denom = jnp.sum(e, axis=-1, keepdims=True)
        inv = pl.reciprocal(denom, approx=True)               # EUP seed ...
        inv = inv * (2.0 - denom * inv)                       # ... + one Newton step
        out_ref[...] = (e * inv).astype(out_ref.dtype)


@functools.partial(jax.jit, static_argnames=("enc_dtype",))
def attention_pallas(decoder_hidden, encoder_outputs, W, b, *,
                     enc_dtype=jnp.bfloat16):
    """decoder_hidden: [B, dec_hid], encoder_outputs: [S, B, 2*enc_hid] (native
    PyTorch layout), W: [attn_dim, attn_in], b: [attn_dim].
    Returns [B, S] softmax attention weights (f32)."""
    B, dec_hid = decoder_hidden.shape
    S, _, enc_feat = encoder_outputs.shape
    attn_dim = W.shape[0]

    A_pad = _round_up(attn_dim, 128)
    enc_bytes = jnp.dtype(enc_dtype).itemsize
    BT, num_bt, ST, num_st, S_pad = _choose_tiles(
        B, S, enc_feat, A_pad, dec_hid, enc_bytes)
    B_grid, S_grid = num_bt * BT, num_st * ST

    # Split the Linear weight (torch.cat order: [decoder_hidden, encoder_outputs])
    # and zero-pad attn_dim -> A_pad lanes (tanh(0) = 0 keeps the sum exact).
    wd = jnp.pad(W[:, :dec_hid].T, ((0, 0), (0, A_pad - attn_dim))).astype(jnp.float32)
    we = jnp.pad(W[:, dec_hid:].T, ((0, 0), (0, A_pad - attn_dim))).astype(enc_dtype)
    bias = jnp.pad(b, (0, A_pad - attn_dim)).astype(jnp.float32).reshape(1, A_pad)

    # Single fused cast(+pad) pass over the big encoder stream (bf16 halves the
    # HBM bytes on the bandwidth-bound v5e/v6e path); matmul accumulates in f32.
    enc = encoder_outputs.astype(enc_dtype)
    if S_grid != S or B_grid != B:
        enc = jnp.pad(enc, ((0, S_grid - S), (0, B_grid - B), (0, 0)))
    dec = decoder_hidden.astype(jnp.float32)
    if B_grid != B:
        dec = jnp.pad(dec, ((0, B_grid - B), (0, 0)))

    scratch_shapes = [pltpu.VMEM((BT, A_pad), jnp.float32)]       # decoder projection
    if num_st > 1:
        scratch_shapes.append(pltpu.VMEM((num_st, ST, BT), jnp.float32))

    out = pl.pallas_call(
        functools.partial(_attention_kernel, S, num_st),
        out_shape=jax.ShapeDtypeStruct((B_grid, S_pad), jnp.float32),
        grid_spec=pltpu.PrefetchScalarGridSpec(
            num_scalar_prefetch=0,
            grid=(num_bt, num_st),                  # (batch tiles, src_len tiles)
            in_specs=[
                pl.BlockSpec((BT, dec_hid), lambda i, j: (i, 0)),
                # Native [S, B, F] layout: batch/src tiles are picked by the
                # BlockSpec, no wrapper-side transpose of the largest input.
                pl.BlockSpec((ST, BT, enc_feat), lambda i, j: (j, i, 0)),
                pl.BlockSpec((dec_hid, A_pad), lambda i, j: (0, 0)),   # resident weights
                pl.BlockSpec((enc_feat, A_pad), lambda i, j: (0, 0)),
                pl.BlockSpec((1, A_pad), lambda i, j: (0, 0)),
            ],
            # Output block resident across the src_len axis (finalized at last step).
            out_specs=pl.BlockSpec((BT, S_pad), lambda i, j: (i, 0)),
            scratch_shapes=scratch_shapes,
        ),
        compiler_params=pltpu.CompilerParams(
            # Batch tiles are independent -> shard across v7x's 2 TensorCores;
            # src_len axis carries the resident scores/output -> arbitrary.
            dimension_semantics=("parallel", "arbitrary"),
            vmem_limit_bytes=_VMEM_LIMIT,
        ),
    )(dec, enc, wd, we, bias)

    return out[:B, :S]


def attention_ref(decoder_hidden, encoder_outputs, W, b):
    """Pure-JAX reference matching the PyTorch forward exactly."""
    S = encoder_outputs.shape[0]
    rep = jnp.repeat(decoder_hidden[:, None, :], S, axis=1)          # [B, S, dec_hid]
    enc = jnp.transpose(encoder_outputs, (1, 0, 2))                  # [B, S, enc_feat]
    x = jnp.concatenate([rep, enc], axis=2)                          # [B, S, attn_in]
    energy = jnp.tanh(x @ W.T + b)                                   # [B, S, attn_dim]
    scores = jnp.sum(energy, axis=2)                                 # [B, S]
    return jax.nn.softmax(scores, axis=1)


if __name__ == "__main__":
    # Small shapes consistent with the module.
    batch = 2
    src_len = 8
    enc_hid_dim = 16
    dec_hid_dim = 32
    attn_dim = 32
    enc_feat = 2 * enc_hid_dim
    attn_in = enc_feat + dec_hid_dim

    key = jax.random.PRNGKey(0)
    k_dec, k_enc, k_w, k_b = jax.random.split(key, 4)

    decoder_hidden = jax.random.normal(k_dec, (batch, dec_hid_dim), dtype=jnp.float32)
    encoder_outputs = jax.random.normal(k_enc, (src_len, batch, enc_feat), dtype=jnp.float32)

    # nn.Linear(attn_in, attn_dim)-style deterministic init: U(-1/sqrt(attn_in), ...)
    bound = 1.0 / (attn_in ** 0.5)
    W = jax.random.uniform(k_w, (attn_dim, attn_in), minval=-bound, maxval=bound,
                           dtype=jnp.float32)
    b = jax.random.uniform(k_b, (attn_dim,), minval=-bound, maxval=bound,
                           dtype=jnp.float32)

    ref = attention_ref(decoder_hidden, encoder_outputs, W, b)

    # Exact f32 path: tight tolerance against the PyTorch-equivalent reference.
    out_f32 = jax.block_until_ready(
        attention_pallas(decoder_hidden, encoder_outputs, W, b, enc_dtype=jnp.float32))
    assert out_f32.shape == (batch, src_len), out_f32.shape
    assert jnp.allclose(out_f32, ref, atol=1e-3, rtol=1e-3), (out_f32, ref)
    assert jnp.allclose(jnp.sum(out_f32, axis=1), jnp.ones((batch,)), atol=1e-3)

    # Default path: bf16 encoder DMA stream (halves HBM bytes on v5e/v6e),
    # f32 accumulate / tanh / softmax.
    out_bf16 = jax.block_until_ready(
        attention_pallas(decoder_hidden, encoder_outputs, W, b))
    assert out_bf16.shape == (batch, src_len), out_bf16.shape
    assert jnp.allclose(out_bf16, ref, atol=2e-2, rtol=2e-2), (out_bf16, ref)
    assert jnp.allclose(jnp.sum(out_bf16, axis=1), jnp.ones((batch,)), atol=1e-3)

    print("KERNEL_OK")
</pallas_src>

<mosaic_0001>
module attributes {stable_mosaic.version = 11 : i64} {
  func.func @_attention_kernel(%arg0: i32, %arg1: i32, %arg2: memref<8x32xf32, #tpu.memory_space<vmem>>, %arg3: memref<8x8x32xf32, #tpu.memory_space<vmem>>, %arg4: memref<32x128xf32, #tpu.memory_space<vmem>>, %arg5: memref<32x128xf32, #tpu.memory_space<vmem>>, %arg6: memref<1x128xf32, #tpu.memory_space<vmem>>, %arg7: memref<8x128xf32, #tpu.memory_space<vmem>>, %arg8: memref<8x128xf32, #tpu.memory_space<vmem>>) attributes {dimension_semantics = [#tpu.dimension_semantics<parallel>, #tpu.dimension_semantics<arbitrary>], iteration_bounds = array<i64: 2, 1>, scalar_prefetch = 0 : i64, scratch_operands = 1 : i64, tpu.core_type = #tpu.core_type<tc>, window_params = [{transform_indices = @transform_0, window_bounds = array<i64: 8, 32>}, {transform_indices = @transform_1, window_bounds = array<i64: 8, 8, 32>}, {pipeline_mode = #tpu.pipeline_mode<synchronous>, transform_indices = @transform_2, window_bounds = array<i64: 32, 128>}, {pipeline_mode = #tpu.pipeline_mode<synchronous>, transform_indices = @transform_3, window_bounds = array<i64: 32, 128>}, {pipeline_mode = #tpu.pipeline_mode<synchronous>, transform_indices = @transform_4, window_bounds = array<i64: 1, 128>}, {transform_indices = @transform_5, window_bounds = array<i64: 8, 128>}]} {
    %c0_i32 = arith.constant 0 : i32
    %0 = arith.cmpi eq, %arg1, %c0_i32 : i32
    %1 = arith.extui %0 : i1 to i32
    %c0_i32_0 = arith.constant 0 : i32
    %2 = arith.cmpi ne, %1, %c0_i32_0 : i32
    scf.if %2 {
      %c0_10 = arith.constant 0 : index
      %c0_11 = arith.constant 0 : index
      %17 = vector.load %arg2[%c0_10, %c0_11] : memref<8x32xf32, #tpu.memory_space<vmem>>, vector<8x32xf32>
      %c0_12 = arith.constant 0 : index
      %c0_13 = arith.constant 0 : index
      %18 = vector.load %arg4[%c0_12, %c0_13] : memref<32x128xf32, #tpu.memory_space<vmem>>, vector<32x128xf32>
      %cst_14 = arith.constant dense<0.000000e+00> : vector<8x128xf32>
      %19 = tpu.matmul %17, %18, %cst_14 {dimension_numbers = #tpu.dot_dimension_numbers<[1], [0], [0], [1], [0, 0, 1, 1], [], []>} : vector<8x32xf32>, vector<32x128xf32>, vector<8x128xf32> -> vector<8x128xf32>
      %c0_15 = arith.constant 0 : index
      %c0_16 = arith.constant 0 : index
      %20 = vector.load %arg6[%c0_15, %c0_16] : memref<1x128xf32, #tpu.memory_space<vmem>>, vector<1x128xf32>
      %21 = vector.broadcast %20 : vector<1x128xf32> to vector<8x128xf32>
      %22 = arith.addf %19, %21 : vector<8x128xf32>
      %c0_17 = arith.constant 0 : index
      %c0_18 = arith.constant 0 : index
      %23 = vector.load %arg8[%c0_17, %c0_18] : memref<8x128xf32, #tpu.memory_space<vmem>>, vector<8x128xf32>
      tpu.vector_store %arg8[%c0_17, %c0_18], %22 {strides = array<i32>} : memref<8x128xf32, #tpu.memory_space<vmem>>, vector<8x128xf32>,
    } else {
    }
    %c0 = arith.constant 0 : index
    %c0_1 = arith.constant 0 : index
    %c0_2 = arith.constant 0 : index
    %3 = vector.load %arg3[%c0, %c0_1, %c0_2] : memref<8x8x32xf32, #tpu.memory_space<vmem>>, vector<8x8x32xf32>
    %4 = vector.shape_cast %3 : vector<8x8x32xf32> to vector<64x32xf32>
    %c0_3 = arith.constant 0 : index
    %c0_4 = arith.constant 0 : index
    %5 = vector.load %arg5[%c0_3, %c0_4] : memref<32x128xf32, #tpu.memory_space<vmem>>, vector<32x128xf32>
    %cst = arith.constant dense<0.000000e+00> : vector<64x128xf32>
    %6 = tpu.matmul %4, %5, %cst {dimension_numbers = #tpu.dot_dimension_numbers<[1], [0], [0], [1], [0, 0, 1, 1], [], []>} : vector<64x32xf32>, vector<32x128xf32>, vector<64x128xf32> -> vector<64x128xf32>
    %7 = vector.shape_cast %6 : vector<64x128xf32> to vector<8x8x128xf32>
    %c0_5 = arith.constant 0 : index
    %c0_6 = arith.constant 0 : index
    %8 = vector.load %arg8[%c0_5, %c0_6] : memref<8x128xf32, #tpu.memory_space<vmem>>, vector<8x128xf32>
    %9 = vector.shape_cast %8 : vector<8x128xf32> to vector<1x8x128xf32>
    %10 = vector.broadcast %9 : vector<1x8x128xf32> to vector<8x8x128xf32>
    %11 = arith.addf %7, %10 : vector<8x8x128xf32>
    %12 = math.tanh %11 : vector<8x8x128xf32>
    %cst_7 = arith.constant dense<0.000000e+00> : vector<8x8xf32>
    %13 = vector.multi_reduction <add>, %12, %cst_7 [2] : vector<8x8x128xf32> to vector<8x8xf32>
    %c0_i32_8 = arith.constant 0 : i32
    %14 = arith.cmpi eq, %arg1, %c0_i32_8 : i32
    %15 = arith.extui %14 : i1 to i32
    %c0_i32_9 = arith.constant 0 : i32
    %16 = arith.cmpi ne, %15, %c0_i32_9 : i32
    scf.if %16 {
      %cst_10 = arith.constant -1.000000e+30 : f32
      %17 = vector.broadcast %cst_10 : f32 to vector<120x8xf32>
      %18 = tpu.concatenate %13, %17 in 0 : vector<8x8xf32>, vector<120x8xf32> -> vector<128x8xf32>
      %19 = tpu.transpose %18, [1, 0] : vector<128x8xf32> -> vector<8x128xf32>
      %20 = tpu.iota {dimensions = array<i32: 1>} : vector<8x128xi32>
      %c8_i32 = arith.constant 8 : i32
      %21 = vector.broadcast %c8_i32 : i32 to vector<8x128xi32>
      %22 = arith.cmpi slt, %20, %21 : vector<8x128xi32>
      %cst_11 = arith.constant -1.000000e+30 : f32
      %23 = vector.broadcast %cst_11 : f32 to vector<8x128xf32>
      %24 = arith.select %22, %19, %23 : vector<8x128xi1>, vector<8x128xf32>
      %cst_12 = arith.constant dense<0xFF800000> : vector<8xf32>
      %25 = vector.multi_reduction <maximumf>, %24, %cst_12 [1] : vector<8x128xf32> to vector<8xf32>
      %26 = vector.shape_cast %25 : vector<8xf32> to vector<8x1xf32>
      %27 = vector.broadcast %26 : vector<8x1xf32> to vector<8x128xf32>
      %28 = arith.subf %24, %27 : vector<8x128xf32>
      %29 = math.exp %28 : vector<8x128xf32>
      %cst_13 = arith.constant dense<0.000000e+00> : vector<8xf32>
      %30 = vector.multi_reduction <add>, %29, %cst_13 [1] : vector<8x128xf32> to vector<8xf32>
      %31 = vector.shape_cast %30 : vector<8xf32> to vector<8x1xf32>
      %32 = tpu.reciprocal %31 {approx = true} : vector<8x1xf32> -> vector<8x1xf32>
      %33 = arith.mulf %31, %32 : vector<8x1xf32>
      %cst_14 = arith.constant 2.000000e+00 : f32
      %34 = vector.broadcast %cst_14 : f32 to vector<8x1xf32>
      %35 = arith.subf %34, %33 : vector<8x1xf32>
      %36 = arith.mulf %32, %35 : vector<8x1xf32>
      %37 = vector.broadcast %36 : vector<8x1xf32> to vector<8x128xf32>
      %38 = arith.mulf %29, %37 : vector<8x128xf32>
      %c0_15 = arith.constant 0 : index
      %c0_16 = arith.constant 0 : index
      %39 = vector.load %arg7[%c0_15, %c0_16] : memref<8x128xf32, #tpu.memory_space<vmem>>, vector<8x128xf32>
      tpu.vector_store %arg7[%c0_15, %c0_16], %38 {strides = array<i32>} : memref<8x128xf32, #tpu.memory_space<vmem>>, vector<8x128xf32>,
    } else {
    }
    return
  }
  func.func @transform_0(%arg0: i32, %arg1: i32) -> (i32, i32) {
    %c0_i32 = arith.constant 0 : i32
    %c0_i32_0 = arith.constant 0 : i32
    return %arg0, %c0_i32 : i32, i32
  }
  func.func @transform_1(%arg0: i32, %arg1: i32) -> (i32, i32, i32) {
    %c0_i32 = arith.constant 0 : i32
    %c0_i32_0 = arith.constant 0 : i32
    return %arg1, %arg0, %c0_i32 : i32, i32, i32
  }
  func.func @transform_2(%arg0: i32, %arg1: i32) -> (i32, i32) {
    %c0_i32 = arith.constant 0 : i32
    %c0_i32_0 = arith.constant 0 : i32
    %c0_i32_1 = arith.constant 0 : i32
    return %c0_i32, %c0_i32_0 : i32, i32
  }
  func.func @transform_3(%arg0: i32, %arg1: i32) -> (i32, i32) {
    %c0_i32 = arith.constant 0 : i32
    %c0_i32_0 = arith.constant 0 : i32
    %c0_i32_1 = arith.constant 0 : i32
    return %c0_i32, %c0_i32_0 : i32, i32
  }
  func.func @transform_4(%arg0: i32, %arg1: i32) -> (i32, i32) {
    %c0_i32 = arith.constant 0 : i32
    %c0_i32_0 = arith.constant 0 : i32
    %c0_i32_1 = arith.constant 0 : i32
    return %c0_i32, %c0_i32_0 : i32, i32
  }
  func.func @transform_5(%arg0: i32, %arg1: i32) -> (i32, i32) {
    %c0_i32 = arith.constant 0 : i32
    %c0_i32_0 = arith.constant 0 : i32
    return %arg0, %c0_i32 : i32, i32
  }
}

</mosaic_0001>

<llo_original>
// kernel: attention_pallas.1
$region0: #{attention_pallas.1}
  #allocation0 [shape = 'u32[]', space=smem, size = 0x4, offset = 0x4, fixed_abs, tag = 'smem constant byte address 0x4 - core index']
  #allocation1 [shape = 'u32[144,128]{1,0:T(1,128)}', space=vmem, size = 0x12000, scoped, tag = 'internal scratch']
  #allocation2 [shape = 'f32[8,128]{1,0:T(8,128)}', space=vmem, size = 0x1000, scoped, tag = 'scratch operand']
  %s0 = inlined_call_operand.vmem [shape: f32[16,32], index: 0, kind: input, shape index: {}]
  %s1 = inlined_call_operand.vmem [shape: f32[8,16,32], index: 1, kind: input, shape index: {}]
  %s2 = inlined_call_operand.vmem [shape: f32[32,128], index: 2, kind: input, shape index: {}]
  %s3 = inlined_call_operand.vmem [shape: f32[32,128], index: 3, kind: input, shape index: {}]
  %s4 = inlined_call_operand.vmem [shape: f32[1,128], index: 4, kind: input, shape index: {}]
  %s5 = inlined_call_operand.vmem [shape: f32[16,128], index: 5, kind: output, shape index: {}]
  %s6 = sld [smem:[#allocation0]]
  $region99: #{attention_pallas.1} parent=0
    _
  %s8 = ssub.s32 1, %s6
  %s9 = scalar_select 0, %s8, %s6
  $region1: #{attention_pallas.1} parent=0
    #allocation3 [shape = 'u8[65536]{0}', space=vmem, size = 0x10000, scoped, tag = 'input window, operand 1']
    loop: start=0, step=1, limit=4
    $region2: #{attention_pallas.1} parent=1 // loop_pre_header
      _
    $region3: #{attention_pallas.1} parent=1 // loop_header
      %s11 = sphi 0, %s15
      %p12 = scmp.ge.s32.totalorder %s11, 4
      %s18 = sphi 0, %s30
      %s19 = sphi 0, %s26
      %s20 = sphi 0, %s18
      %s21 = sphi 0, %s19
      %s22 = sphi 0, %s20
      %s23 = sphi 0, %s21
      %s33 = sphi 0, %s35
      %s36 = sphi 0, %s33
      %s37 = sphi 0, %s36
      %s53 = sphi 0, %s37
      %s61 = sphi 0, %s63
      %s64 = sphi 0, %s61
      %s65 = sphi 0, %s64
      %s81 = sphi 0, %s65
      %s85 = sphi 0, %s85
      %s87 = sphi 0, %s85
      %s88 = sphi 0, %s87
      %s102 = sphi 0, %s88
      %s106 = sphi 0, %s106
      %s108 = sphi 0, %s106
      %s109 = sphi 0, %s108
      %s123 = sphi 0, %s109
      %s127 = sphi 0, %s127
      %s129 = sphi 0, %s127
      %s130 = sphi 0, %s129
      %s144 = sphi 0, %s130
      %s150 = sphi 0, %s152
      %s153 = sphi 0, %s150
      %s154 = sphi 0, %s153
      %s170 = sphi 0, %s154
    $region4: #{attention_pallas.1} parent=1 // loop_header_branch
      %14 = sbr.rel (%p12) target = $region8
    $region5: #{attention_pallas.1} parent=1 // loop_body
      %s16 = ssub.s32 %s11, 1
      %s17 = ssub.s32 %s11, 2
      %s24 = sadd.s32 1, %s19
      %p25 = scmp.ge.s32.totalorder %s24, 1
      %s26 = scalar_select %p25, 0, %s24
      %s27 = sadd.s32 1, %s18
      %s28 = scalar_select %p25, %s27, %s18
      %p29 = scmp.ge.s32.totalorder %s28, 2
      %s30 = scalar_select %p29, 0, %s28
      %s31 = ssub.s32 %s18, %s30
      %p32 = scmp.eq.s32.totalorder %s31, 0
      %s34 = sadd.s32 %s33, 1
      %s35 = scalar_select %p32, %s33, %s34
      %p38 = pneg %p32
      %p39 = scmp.eq.s32.totalorder %s11, 1
      %p40 = por %p38, %p39
      %p41 = scmp.ne.s32.totalorder %s33, %s36
      %p42 = scmp.eq.s32.totalorder %s11, 0
      %p43 = por %p41, %p42
      %p44 = scmp.ne.s32.totalorder %s33, %s36
      %p45 = scmp.eq.s32.totalorder %s16, 1
      %p46 = por %p44, %p45
      %p47 = scmp.ne.s32.totalorder %s36, %s37
      %p48 = scmp.eq.s32.totalorder %s16, 0
      %p49 = por %p47, %p48
      %p50 = scmp.ne.s32.totalorder %s36, %s37
      %p51 = scmp.eq.s32.totalorder %s17, 1
      %p52 = por %p50, %p51
      %p54 = scmp.ne.s32.totalorder %s37, %s53
      %p55 = scmp.eq.s32.totalorder %s17, 0
      %p56 = por %p54, %p55
      %s57 = ssub.s32 %s19, %s26
      %s58 = ssub.s32 %s18, %s30
      %s59 = sor.u32 %s57, %s58
      %p60 = scmp.eq.s32.totalorder %s59, 0
      %s62 = sadd.s32 %s61, 1
      %s63 = scalar_select %p60, %s61, %s62
      %p66 = pneg %p60
      %p67 = scmp.eq.s32.totalorder %s11, 1
      %p68 = por %p66, %p67
      %p69 = scmp.ne.s32.totalorder %s61, %s64
      %p70 = scmp.eq.s32.totalorder %s11, 0
      %p71 = por %p69, %p70
      %p72 = scmp.ne.s32.totalorder %s61, %s64
      %p73 = scmp.eq.s32.totalorder %s16, 1
      %p74 = por %p72, %p73
      %p75 = scmp.ne.s32.totalorder %s64, %s65
      %p76 = scmp.eq.s32.totalorder %s16, 0
      %p77 = por %p75, %p76
      %p78 = scmp.ne.s32.totalorder %s64, %s65
      %p79 = scmp.eq.s32.totalorder %s17, 1
      %p80 = por %p78, %p79
      %p82 = scmp.ne.s32.totalorder %s65, %s81
      %p83 = scmp.eq.s32.totalorder %s17, 0
      %p84 = por %p82, %p83
      %s86 = sadd.s32 %s85, 1
      %p89 = scmp.eq.s32.totalorder %s11, 1
      %p90 = scmp.ne.s32.totalorder %s85, %s87
      %p91 = scmp.eq.s32.totalorder %s11, 0
      %p92 = por %p90, %p91
      %p93 = scmp.ne.s32.totalorder %s85, %s87
      %p94 = scmp.eq.s32.totalorder %s16, 1
      %p95 = por %p93, %p94
      %p96 = scmp.ne.s32.totalorder %s87, %s88
      %p97 = scmp.eq.s32.totalorder %s16, 0
      %p98 = por %p96, %p97
      %p99 = scmp.ne.s32.totalorder %s87, %s88
      %p100 = scmp.eq.s32.totalorder %s17, 1
      %p101 = por %p99, %p100
      %p103 = scmp.ne.s32.totalorder %s88, %s102
      %p104 = scmp.eq.s32.totalorder %s17, 0
      %p105 = por %p103, %p104
      %s107 = sadd.s32 %s106, 1
      %p110 = scmp.eq.s32.totalorder %s11, 1
      %p111 = scmp.ne.s32.totalorder %s106, %s108
      %p112 = scmp.eq.s32.totalorder %s11, 0
      %p113 = por %p111, %p112
      %p114 = scmp.ne.s32.totalorder %s106, %s108
      %p115 = scmp.eq.s32.totalorder %s16, 1
      %p116 = por %p114, %p115
      %p117 = scmp.ne.s32.totalorder %s108, %s109
      %p118 = scmp.eq.s32.totalorder %s16, 0
      %p119 = por %p117, %p118
      %p120 = scmp.ne.s32.totalorder %s108, %s109
      %p121 = scmp.eq.s32.totalorder %s17, 1
      %p122 = por %p120, %p121
      %p124 = scmp.ne.s32.totalorder %s109, %s123
      %p125 = scmp.eq.s32.totalorder %s17, 0
      %p126 = por %p124, %p125
      %s128 = sadd.s32 %s127, 1
      %p131 = scmp.eq.s32.totalorder %s11, 1
      %p132 = scmp.ne.s32.totalorder %s127, %s129
      %p133 = scmp.eq.s32.totalorder %s11, 0
      %p134 = por %p132, %p133
      %p135 = scmp.ne.s32.totalorder %s127, %s129
      %p136 = scmp.eq.s32.totalorder %s16, 1
      %p137 = por %p135, %p136
      %p138 = scmp.ne.s32.totalorder %s129, %s130
      %p139 = scmp.eq.s32.totalorder %s16, 0
      %p140 = por %p138, %p139
      %p141 = scmp.ne.s32.totalorder %s129, %s130
      %p142 = scmp.eq.s32.totalorder %s17, 1
      %p143 = por %p141, %p142
      %p145 = scmp.ne.s32.totalorder %s130, %s144
      %p146 = scmp.eq.s32.totalorder %s17, 0
      %p147 = por %p145, %p146
      %s148 = ssub.s32 %s18, %s30
      %p149 = scmp.eq.s32.totalorder %s148, 0
      %s151 = sadd.s32 %s150, 1
      %s152 = scalar_select %p149, %s150, %s151
      %p155 = pneg %p149
      %p156 = scmp.eq.s32.totalorder %s11, 1
      %p157 = por %p155, %p156
      %p158 = scmp.ne.s32.totalorder %s150, %s153
      %p159 = scmp.eq.s32.totalorder %s11, 0
      %p160 = por %p158, %p159
      %p161 = scmp.ne.s32.totalorder %s150, %s153
      %p162 = scmp.eq.s32.totalorder %s16, 1
      %p163 = por %p161, %p162
      %p164 = scmp.ne.s32.totalorder %s153, %s154
      %p165 = scmp.eq.s32.totalorder %s16, 0
      %p166 = por %p164, %p165
      %p167 = scmp.ne.s32.totalorder %s153, %s154
      %p168 = scmp.eq.s32.totalorder %s17, 1
      %p169 = por %p167, %p168
      %p171 = scmp.ne.s32.totalorder %s154, %s170
      %p172 = scmp.eq.s32.totalorder %s17, 0
      %p173 = por %p171, %p172
      %p174 = scmp.le.s32.totalorder 1, %s11
      %p175 = scmp.lt.s32.totalorder %s11, 3
      %p176 = pnand %p174, %p175
      %p177 = pneg %p176
      // Predicated region
      $region9: #{attention_pallas.1} parent=5 // pred_check
        _
      $region10: #{attention_pallas.1} parent=5 // pred_check_branch
        %179 = sbr.rel (%p176) target = $region12
      $region11: #{attention_pallas.1} parent=5 // pred_region
        %s180 = ssub.s32 %s11, 1
        // Predicated region
        $region13: #{attention_pallas.1} parent=11 // pred_check
          %p181 = pneg %p98
        $region14: #{attention_pallas.1} parent=11 // pred_check_branch
          %183 = sbr.rel (%p181) target = $region16
        $region15: #{attention_pallas.1} parent=11 // pred_region
          _
        $region16: #{attention_pallas.1} parent=11 // pred_fallthru
          _
        // Predicated region
        $region17: #{attention_pallas.1} parent=11 // pred_check
          %p184 = pneg %p119
        $region18: #{attention_pallas.1} parent=11 // pred_check_branch
          %186 = sbr.rel (%p184) target = $region20
        $region19: #{attention_pallas.1} parent=11 // pred_region
          _
        $region20: #{attention_pallas.1} parent=11 // pred_fallthru
          _
        // Predicated region
        $region21: #{attention_pallas.1} parent=11 // pred_check
          %p187 = pneg %p140
        $region22: #{attention_pallas.1} parent=11 // pred_check_branch
          %189 = sbr.rel (%p187) target = $region24
        $region23: #{attention_pallas.1} parent=11 // pred_region
          _
        $region24: #{attention_pallas.1} parent=11 // pred_fallthru
          _
      $region12: #{attention_pallas.1} parent=5 // pred_fallthru
        _
      %p190 = scmp.lt.s32.totalorder %s11, 2
      // Predicated region
      $region25: #{attention_pallas.1} parent=5 // pred_check
        %p191 = pneg %p190
      $region26: #{attention_pallas.1} parent=5 // pred_check_branch
        %193 = sbr.rel (%p191) target = $region28
      $region27: #{attention_pallas.1} parent=5 // pred_region
        // Predicated region
        $region29: #{attention_pallas.1} parent=27 // pred_check
          %p194 = pneg %p43
        $region30: #{attention_pallas.1} parent=27 // pred_check_branch
          %196 = sbr.rel (%p194) target = $region32
        $region31: #{attention_pallas.1} parent=27 // pred_region
          %p197 = scmp.lt.s32.totalorder %s18, 1
          %s198 = scalar_select %p197, %s18, 1
          %s199 = smul.addr %s198, 8
          %s200 = scalar_lea.vmem %s0, %s199
        $region32: #{attention_pallas.1} parent=27 // pred_fallthru
          _
        // Predicated region
        $region33: #{attention_pallas.1} parent=27 // pred_check
          %p201 = pneg %p71
        $region34: #{attention_pallas.1} parent=27 // pred_check_branch
          %203 = sbr.rel (%p201) target = $region36
        $region35: #{attention_pallas.1} parent=27 // pred_region
          %s204 = sand.u32 %s61, 1
          %s205 = sand.u32 %s61, 1
          %s206 = smul.addr %s205, 64
          %s207 = scalar_lea.vmem [#allocation3], %s206
          %s208 = smul.u32 8, %s19
          %s209 = smul.addr %s208, 2
          %s210 = sadd.s32 %s18, %s209
          %s211 = smul.addr %s210, 8
          %s212 = scalar_lea.vmem %s1, %s211
          // Predicated region
          $region37: #{attention_pallas.1} parent=35 // pred_check
            _
          $region38: #{attention_pallas.1} parent=35 // pred_check_branch
            %214 = sbr.rel (0) target = $region40
          $region39: #{attention_pallas.1} parent=35 // pred_region
            // Predicated region
            $region41: #{attention_pallas.1} parent=39 // pred_check
              _
            $region42: #{attention_pallas.1} parent=39 // pred_check_branch
              %216 = sbr.rel (0) target = $region44
            $region43: #{attention_pallas.1} parent=39 // pred_region
              // Predicated region
              $region56: #{attention_pallas.1} parent=43 // pred_check
                _
              $region57: #{attention_pallas.1} parent=43 // pred_check_branch
                %246 = sbr.rel (0) target = $region59
              $region58: #{attention_pallas.1} parent=43 // pred_region
                loop: start=0, step=1, limit=1
                $region60: #{attention_pallas.1} parent=58 // loop_pre_header
                  _
                $region61: #{attention_pallas.1} parent=58 // loop_header
                  %s248 = sphi 0, %s252
                  %p249 = scmp.ge.s32.totalorder %s248, 1
                  %s253 = sphi %s212, %s212
                  %s254 = sphi %s207, %s207
                $region62: #{attention_pallas.1} parent=58 // loop_header_branch
                  %251 = sbr.rel (%p249) target = $region66
                $region63: #{attention_pallas.1} parent=58 // loop_body
                  %v255 = vld [vmem:[%s253] sm:$0xff]
                  %256 = vst [vmem:[%s254] sm:$0xff] %v255
                  %v257 = vld [vmem:[%s253 + $0x10] sm:$0xff]
                  %258 = vst [vmem:[%s254 + $0x8] sm:$0xff] %v257
                  %v259 = vld [vmem:[%s253 + $0x20] sm:$0xff]
                  %260 = vst [vmem:[%s254 + $0x10] sm:$0xff] %v259
                  %v261 = vld [vmem:[%s253 + $0x30] sm:$0xff]
                  %262 = vst [vmem:[%s254 + $0x18] sm:$0xff] %v261
                  %v263 = vld [vmem:[%s253 + $0x40] sm:$0xff]
                  %264 = vst [vmem:[%s254 + $0x20] sm:$0xff] %v263
                  %v265 = vld [vmem:[%s253 + $0x50] sm:$0xff]
                  %266 = vst [vmem:[%s254 + $0x28] sm:$0xff] %v265
                  %v267 = vld [vmem:[%s253 + $0x60] sm:$0xff]
                  %268 = vst [vmem:[%s254 + $0x30] sm:$0xff] %v267
                  %v269 = vld [vmem:[%s253 + $0x70] sm:$0xff]
                  %270 = vst [vmem:[%s254 + $0x38] sm:$0xff] %v269
                $region64: #{attention_pallas.1} parent=58 // loop_footer
                  %s252 = sadd.s32 1, %s248
                $region65: #{attention_pallas.1} parent=58 // loop_footer_branch
                  %247 = sbr.rel target = $region61
                $region66: #{attention_pallas.1} parent=58 // loop_exit
                  _
              $region59: #{attention_pallas.1} parent=43 // pred_fallthru
                _
              // Predicated region
              $region67: #{attention_pallas.1} parent=43 // pred_check
                _
              $region68: #{attention_pallas.1} parent=43 // pred_check_branch
                %272 = sbr.rel target = $region70
              $region69: #{attention_pallas.1} parent=43 // pred_region
                _
              $region70: #{attention_pallas.1} parent=43 // pred_fallthru
                _
            $region44: #{attention_pallas.1} parent=39 // pred_fallthru
              _
            // Predicated region
            $region45: #{attention_pallas.1} parent=39 // pred_check
              _
            $region46: #{attention_pallas.1} parent=39 // pred_check_branch
              %218 = sbr.rel target = $region48
            $region47: #{attention_pallas.1} parent=39 // pred_region
              %s220 = ssub.s32 256, 1
              loop: start=0, step=1, limit=1
              $region49: #{attention_pallas.1} parent=47 // loop_pre_header
                _
              $region50: #{attention_pallas.1} parent=47 // loop_header
                %s222 = sphi 0, %s226
                %p223 = scmp.ge.s32.totalorder %s222, 1
                %s227 = sphi %s212, %s212
                %s228 = sphi %s207, %s207
              $region51: #{attention_pallas.1} parent=47 // loop_header_branch
                %225 = sbr.rel (%p223) target = $region55
              $region52: #{attention_pallas.1} parent=47 // loop_body
                %v229 = vld [vmem:[%s227] sm:%s220]
                %230 = vst [vmem:[%s228] sm:%s220] %v229
                %v231 = vld [vmem:[%s227 + $0x10] sm:%s220]
                %232 = vst [vmem:[%s228 + $0x8] sm:%s220] %v231
                %v233 = vld [vmem:[%s227 + $0x20] sm:%s220]
                %234 = vst [vmem:[%s228 + $0x10] sm:%s220] %v233
                %v235 = vld [vmem:[%s227 + $0x30] sm:%s220]
                %236 = vst [vmem:[%s228 + $0x18] sm:%s220] %v235
                %v237 = vld [vmem:[%s227 + $0x40] sm:%s220]
                %238 = vst [vmem:[%s228 + $0x20] sm:%s220] %v237
                %v239 = vld [vmem:[%s227 + $0x50] sm:%s220]
                %240 = vst [vmem:[%s228 + $0x28] sm:%s220] %v239
                %v241 = vld [vmem:[%s227 + $0x60] sm:%s220]
                %242 = vst [vmem:[%s228 + $0x30] sm:%s220] %v241
                %v243 = vld [vmem:[%s227 + $0x70] sm:%s220]
                %244 = vst [vmem:[%s228 + $0x38] sm:%s220] %v243
              $region53: #{attention_pallas.1} parent=47 // loop_footer
                %s226 = sadd.s32 1, %s222
              $region54: #{attention_pallas.1} parent=47 // loop_footer_branch
                %221 = sbr.rel target = $region50
              $region55: #{attention_pallas.1} parent=47 // loop_exit
                _
            $region48: #{attention_pallas.1} parent=39 // pred_fallthru
              _
          $region40: #{attention_pallas.1} parent=35 // pred_fallthru
            _
          %273 = vnop
        $region36: #{attention_pallas.1} parent=27 // pred_fallthru
          _
      $region28: #{attention_pallas.1} parent=5 // pred_fallthru
        _
      %p274 = scmp.le.s32.totalorder 1, %s11
      %p275 = scmp.lt.s32.totalorder %s11, 3
      %p276 = pnand %p274, %p275
      %p277 = pneg %p276
      // Predicated region
      $region71: #{attention_pallas.1} parent=5 // pred_check
        _
      $region72: #{attention_pallas.1} parent=5 // pred_check_branch
        %279 = sbr.rel (%p276) target = $region74
      $region73: #{attention_pallas.1} parent=5 // pred_region
        %s280 = ssub.s32 %s11, 1
        %s281 = sand.u32 %s64, 1
        %s282 = sand.u32 %s64, 1
        %s283 = smul.addr %s282, 64
        %s284 = scalar_lea.vmem [#allocation3], %s283
        // Predicated region
        $region75: #{attention_pallas.1} parent=73 // pred_check
          %p285 = pneg %p77
        $region76: #{attention_pallas.1} parent=73 // pred_check_branch
          %287 = sbr.rel (%p285) target = $region78
        $region77: #{attention_pallas.1} parent=73 // pred_region
          _
        $region78: #{attention_pallas.1} parent=73 // pred_fallthru
          _
        %p288 = scmp.lt.s32.totalorder %s20, 1
        %s289 = scalar_select %p288, %s20, 1
        %s290 = smul.addr %s289, 8
        %s291 = scalar_lea.vmem %s0, %s290
        %p292 = pneg %p49
        %p293 = pneg %p46
        %s294 = sand.u32 %s64, 1
        %s295 = sand.u32 %s64, 1
        %s296 = smul.addr %s295, 64
        %s297 = scalar_lea.vmem [#allocation3], %s296
        %p298 = pneg %p77
        %p299 = pneg %p74
        %p300 = pneg %p98
        %p301 = pneg %p95
        %p302 = pneg %p119
        %p303 = pneg %p116
        %p304 = pneg %p140
        %p305 = pneg %p137
        %p306 = pneg %p166
        %p307 = pneg %p163
        %p308 = scmp.lt.s32.totalorder %s20, 1
        %s309 = scalar_select %p308, %s20, 1
        %s310 = smul.addr %s309, 8
        %s311 = scalar_lea.vmem %s5, %s310
        %p312 = scmp.lt.s32.totalorder %s20, 1
        %s313 = scalar_select %p312, %s20, 1
        %s314 = smul.addr %s313, 8
        %s315 = scalar_lea.vmem %s0, %s314
        %s316 = smul.u32 8, %s21
        %p317 = scmp.lt.s32.totalorder %s20, 1
        %s318 = scalar_select %p317, %s20, 1
        %s319 = smul.addr %s318, 8
        %s320 = scalar_lea.vmem %s5, %s319
        %p321 = scmp.eq.s32.totalorder %s21, 0
        // Predicated region
        $region79: #{attention_pallas.1} parent=73 // pred_check
          %p322 = pneg %p321
        $region80: #{attention_pallas.1} parent=73 // pred_check_branch
          %324 = sbr.rel (%p322) target = $region82
        $region81: #{attention_pallas.1} parent=73 // pred_region
          %v325 = vld [vmem:[%s315] sm:$0xff]
          %v326 = vld [vmem:[%s2] sm:$0xff]
          %v327 = vld [vmem:[%s2 + $0x8] sm:$0xff]
          %v328 = vld [vmem:[%s2 + $0x10] sm:$0xff]
          %v329 = vld [vmem:[%s2 + $0x18] sm:$0xff]
          %v330 = vld [vmem:[%s4] sm:$0x1]
          %v332 = vlaneseq
          %v333 = vshrl.u32 %v332, 7
          %v334 = vsub.s32 0, %v333
          %v335 = vrot.slane %v330, %v334
          %vm337 = vcmask 261120
          %v339 = vsel %vm337, %v325, 0
          %341 = vmatprep.subr.mxu0 0.0
          %342 = vmatpush1.msra.mxu0 0.0
          %343 = vmatprep.subr.mxu0 0.0
          %344 = vmatpush1.msra.mxu0 0.0
          %345 = vmatprep.subr.mxu0 0.0
          %346 = vmatpush1.msra.mxu0 0.0
          %347 = vmatprep.subr.mxu0 0.0
          %348 = vmatpush1.msra.mxu0 0.0
          %349 = vmatprep.subr.mxu0 0.0
          %350 = vmatpush1.msra.mxu0 0.0
          %351 = vmatprep.subr.mxu0 0.0
          %352 = vmatpush1.msra.mxu0 0.0
          %353 = vmatprep.subr.mxu0 0.0
          %354 = vmatpush1.msra.mxu0 0.0
          %355 = vmatprep.subr.mxu0 0.0
          %356 = vmatpush1.msra.mxu0 0.0
          %357 = vmatprep.subr.mxu0 0.0
          %358 = vmatpush1.msra.mxu0 0.0
          %359 = vmatprep.subr.mxu0 0.0
          %360 = vmatpush1.msra.mxu0 0.0
          %361 = vmatprep.subr.mxu0 0.0
          %362 = vmatpush1.msra.mxu0 0.0
          %363 = vmatprep.subr.mxu0 0.0
          %364 = vmatpush1.msra.mxu0 0.0
          %365 = vmatprep.subr.mxu0 0.0
          %366 = vmatpush1.msra.mxu0 %v329
          %367 = vmatprep.subr.mxu0 0.0
          %368 = vmatpush1.msra.mxu0 %v328
          %369 = vmatprep.subr.mxu0 0.0
          %370 = vmatpush1.msra.mxu0 %v327
          %371 = vmatprep.subr.mxu0 0.0
          %372 = vmatpush1.msra.mxu0 %v326
          %373 = vmatprep.subr.mxu0 0.0
          %374 = vmatpush2.msra.mxu0 0.0
          %375 = vmatprep.subr.mxu0 0.0
          %376 = vmatpush2.msra.mxu0 0.0
          %377 = vmatprep.subr.mxu0 0.0
          %378 = vmatpush2.msra.mxu0 0.0
          %379 = vmatprep.subr.mxu0 0.0
          %380 = vmatpush2.msra.mxu0 0.0
          %381 = vmatprep.subr.mxu0 0.0
          %382 = vmatpush2.msra.mxu0 0.0
          %383 = vmatprep.subr.mxu0 0.0
          %384 = vmatpush2.msra.mxu0 0.0
          %385 = vmatprep.subr.mxu0 0.0
          %386 = vmatpush2.msra.mxu0 0.0
          %387 = vmatprep.subr.mxu0 0.0
          %388 = vmatpush2.msra.mxu0 0.0
          %389 = vmatprep.subr.mxu0 0.0
          %390 = vmatpush2.msra.mxu0 0.0
          %391 = vmatprep.subr.mxu0 0.0
          %392 = vmatpush2.msra.mxu0 0.0
          %393 = vmatprep.subr.mxu0 0.0
          %394 = vmatpush2.msra.mxu0 0.0
          %395 = vmatprep.subr.mxu0 0.0
          %396 = vmatpush2.msra.mxu0 0.0
          %397 = vmatprep.subr.mxu0 0.0
          %398 = vmatpush2.msra.mxu0 0.0
          %399 = vmatprep.subr.mxu0 0.0
          %400 = vmatpush2.msra.mxu0 0.0
          %401 = vmatprep.subr.mxu0 0.0
          %402 = vmatpush2.msra.mxu0 0.0
          %403 = vmatprep.subr.mxu0 0.0
          %404 = vmatpush2.msra.mxu0 0.0
          %405 = vmatprep.mubr.f32.mxu0 0.0
          %406 = vmatmul.mubr.f32.gmra.mxu0 %v339
          %v407 = vpop.f32.mrf.mxu0
          %v408 = vadd.f32 %v335, %v407
          %v409 = vpop.f32.mrf.mxu0
          %410 = vdwg.mxu0
          %411 = vst [vmem:[#allocation2] sm:$0xff] %v408
        $region82: #{attention_pallas.1} parent=73 // pred_fallthru
          _
        %v412 = vld [vmem:[%s284] sm:$0xff]
        %v413 = vld [vmem:[%s284 + $0x8] sm:$0xff]
        %v414 = vld [vmem:[%s284 + $0x10] sm:$0xff]
        %v415 = vld [vmem:[%s284 + $0x18] sm:$0xff]
        %v416 = vld [vmem:[%s284 + $0x20] sm:$0xff]
        %v417 = vld [vmem:[%s284 + $0x28] sm:$0xff]
        %v418 = vld [vmem:[%s284 + $0x30] sm:$0xff]
        %v419 = vld [vmem:[%s284 + $0x38] sm:$0xff]
        %v420 = vld [vmem:[%s3] sm:$0xff]
        %v421 = vld [vmem:[%s3 + $0x8] sm:$0xff]
        %v422 = vld [vmem:[%s3 + $0x10] sm:$0xff]
        %v423 = vld [vmem:[%s3 + $0x18] sm:$0xff]
        %vm424 = vcmask 261120
        %v426 = vsel %vm424, %v412, 0
        %v429 = vsel %vm424, %v413, 0
        %v432 = vsel %vm424, %v414, 0
        %v435 = vsel %vm424, %v415, 0
        %v438 = vsel %vm424, %v416, 0
        %v441 = vsel %vm424, %v417, 0
        %v444 = vsel %vm424, %v418, 0
        %v447 = vsel %vm424, %v419, 0
        %449 = vmatprep.subr.mxu0 0.0
        %450 = vmatpush1.msra.mxu0 0.0
        %451 = vmatprep.subr.mxu0 0.0
        %452 = vmatpush1.msra.mxu0 0.0
        %453 = vmatprep.subr.mxu0 0.0
        %454 = vmatpush1.msra.mxu0 0.0
        %455 = vmatprep.subr.mxu0 0.0
        %456 = vmatpush1.msra.mxu0 0.0
        %457 = vmatprep.subr.mxu0 0.0
        %458 = vmatpush1.msra.mxu0 0.0
        %459 = vmatprep.subr.mxu0 0.0
        %460 = vmatpush1.msra.mxu0 0.0
        %461 = vmatprep.subr.mxu0 0.0
        %462 = vmatpush1.msra.mxu0 0.0
        %463 = vmatprep.subr.mxu0 0.0
        %464 = vmatpush1.msra.mxu0 0.0
        %465 = vmatprep.subr.mxu0 0.0
        %466 = vmatpush1.msra.mxu0 0.0
        %467 = vmatprep.subr.mxu0 0.0
        %468 = vmatpush1.msra.mxu0 0.0
        %469 = vmatprep.subr.mxu0 0.0
        %470 = vmatpush1.msra.mxu0 0.0
        %471 = vmatprep.subr.mxu0 0.0
        %472 = vmatpush1.msra.mxu0 0.0
        %473 = vmatprep.subr.mxu0 0.0
        %474 = vmatpush1.msra.mxu0 %v423
        %475 = vmatprep.subr.mxu0 0.0
        %476 = vmatpush1.msra.mxu0 %v422
        %477 = vmatprep.subr.mxu0 0.0
        %478 = vmatpush1.msra.mxu0 %v421
        %479 = vmatprep.subr.mxu0 0.0
        %480 = vmatpush1.msra.mxu0 %v420
        %481 = vmatprep.subr.mxu0 0.0
        %482 = vmatpush2.msra.mxu0 0.0
        %483 = vmatprep.subr.mxu0 0.0
        %484 = vmatpush2.msra.mxu0 0.0
        %485 = vmatprep.subr.mxu0 0.0
        %486 = vmatpush2.msra.mxu0 0.0
        %487 = vmatprep.subr.mxu0 0.0
        %488 = vmatpush2.msra.mxu0 0.0
        %489 = vmatprep.subr.mxu0 0.0
        %490 = vmatpush2.msra.mxu0 0.0
        %491 = vmatprep.subr.mxu0 0.0
        %492 = vmatpush2.msra.mxu0 0.0
        %493 = vmatprep.subr.mxu0 0.0
        %494 = vmatpush2.msra.mxu0 0.0
        %495 = vmatprep.subr.mxu0 0.0
        %496 = vmatpush2.msra.mxu0 0.0
        %497 = vmatprep.subr.mxu0 0.0
        %498 = vmatpush2.msra.mxu0 0.0
        %499 = vmatprep.subr.mxu0 0.0
        %500 = vmatpush2.msra.mxu0 0.0
        %501 = vmatprep.subr.mxu0 0.0
        %502 = vmatpush2.msra.mxu0 0.0
        %503 = vmatprep.subr.mxu0 0.0
        %504 = vmatpush2.msra.mxu0 0.0
        %505 = vmatprep.subr.mxu0 0.0
        %506 = vmatpush2.msra.mxu0 0.0
        %507 = vmatprep.subr.mxu0 0.0
        %508 = vmatpush2.msra.mxu0 0.0
        %509 = vmatprep.subr.mxu0 0.0
        %510 = vmatpush2.msra.mxu0 0.0
        %511 = vmatprep.subr.mxu0 0.0
        %512 = vmatpush2.msra.mxu0 0.0
        %513 = vmatprep.mubr.f32.mxu0 0.0
        %514 = vmatmul.mubr.f32.gmra.mxu0 %v426
        %v515 = vpop.f32.mrf.mxu0
        %v516 = vadd.f32 0.0, %v515
        %v517 = vpop.f32.mrf.mxu0
        %518 = vmatprep.mubr.f32.mxu0 0.0
        %519 = vmatmul.mubr.f32.gmra.mxu0 %v429
        %v520 = vpop.f32.mrf.mxu0
        %v521 = vadd.f32 0.0, %v520
        %v522 = vpop.f32.mrf.mxu0
        %523 = vmatprep.mubr.f32.mxu0 0.0
        %524 = vmatmul.mubr.f32.gmra.mxu0 %v432
        %v525 = vpop.f32.mrf.mxu0
        %v526 = vadd.f32 0.0, %v525
        %v527 = vpop.f32.mrf.mxu0
        %528 = vmatprep.mubr.f32.mxu0 0.0
        %529 = vmatmul.mubr.f32.gmra.mxu0 %v435
        %v530 = vpop.f32.mrf.mxu0
        %v531 = vadd.f32 0.0, %v530
        %v532 = vpop.f32.mrf.mxu0
        %533 = vmatprep.mubr.f32.mxu0 0.0
        %534 = vmatmul.mubr.f32.gmra.mxu0 %v438
        %v535 = vpop.f32.mrf.mxu0
        %v536 = vadd.f32 0.0, %v535
        %v537 = vpop.f32.mrf.mxu0
        %538 = vmatprep.mubr.f32.mxu0 0.0
        %539 = vmatmul.mubr.f32.gmra.mxu0 %v441
        %v540 = vpop.f32.mrf.mxu0
        %v541 = vadd.f32 0.0, %v540
        %v542 = vpop.f32.mrf.mxu0
        %543 = vmatprep.mubr.f32.mxu0 0.0
        %544 = vmatmul.mubr.f32.gmra.mxu0 %v444
        %v545 = vpop.f32.mrf.mxu0
        %v546 = vadd.f32 0.0, %v545
        %v547 = vpop.f32.mrf.mxu0
        %548 = vmatprep.mubr.f32.mxu0 0.0
        %549 = vmatmul.mubr.f32.gmra.mxu0 %v447
        %v550 = vpop.f32.mrf.mxu0
        %v551 = vadd.f32 0.0, %v550
        %v552 = vpop.f32.mrf.mxu0
        %553 = vdwg.mxu0
        %v554 = vld [vmem:[#allocation2] sm:$0xff]
        %v555 = vadd.f32 %v516, %v554
        %v556 = vadd.f32 %v521, %v554
        %v557 = vadd.f32 %v526, %v554
        %v558 = vadd.f32 %v531, %v554
        %v559 = vadd.f32 %v536, %v554
        %v560 = vadd.f32 %v541, %v554
        %v561 = vadd.f32 %v546, %v554
        %v562 = vadd.f32 %v551, %v554
        %v563 = vtanh.pop %v555
        %v564 = vtanh.pop %v556
        %v565 = vtanh.pop %v557
        %v566 = vtanh.pop %v558
        %v567 = vtanh.pop %v559
        %v568 = vtanh.pop %v560
        %v569 = vtanh.pop %v561
        %v570 = vtanh.pop %v562
        %571 = vadd.xlane.f32.xlu0 %v563
        %v572 = vpop.xlane.xlu0 %571
        %573 = vadd.xlane.f32.xlu0 %v564
        %v574 = vpop.xlane.xlu0 %573
        %575 = vadd.xlane.f32.xlu0 %v565
        %v576 = vpop.xlane.xlu0 %575
        %577 = vadd.xlane.f32.xlu0 %v566
        %v578 = vpop.xlane.xlu0 %577
        %579 = vadd.xlane.f32.xlu0 %v567
        %v580 = vpop.xlane.xlu0 %579
        %581 = vadd.xlane.f32.xlu0 %v568
        %v582 = vpop.xlane.xlu0 %581
        %583 = vadd.xlane.f32.xlu0 %v569
        %v584 = vpop.xlane.xlu0 %583
        %585 = vadd.xlane.f32.xlu0 %v570
        %v586 = vpop.xlane.xlu0 %585
        // Predicated region
        $region83: #{attention_pallas.1} parent=73 // pred_check
          %p587 = pneg %p321
        $region84: #{attention_pallas.1} parent=73 // pred_check_branch
          %589 = sbr.rel (%p587) target = $region86
        $region85: #{attention_pallas.1} parent=73 // pred_region
          %v598 = vlaneseq
          %v599 = vand.u32 %v598, 127
          %v600 = vlaneseq
          %v601 = vshrl.u32 %v600, 7
          %v602 = vsub.s32 %v599, %v601
          %v603 = vrot.slane %v572, %v602
          %v604 = vlaneseq
          %v605 = vshrl.u32 %v604, 7
          %v606 = vsub.s32 %v599, %v605
          %v607 = vrot.slane %v574, %v606
          %v608 = vlaneseq
          %v609 = vshrl.u32 %v608, 7
          %v610 = vsub.s32 %v599, %v609
          %v611 = vrot.slane %v576, %v610
          %v612 = vlaneseq
          %v613 = vshrl.u32 %v612, 7
          %v614 = vsub.s32 %v599, %v613
          %v615 = vrot.slane %v578, %v614
          %v616 = vlaneseq
          %v617 = vshrl.u32 %v616, 7
          %v618 = vsub.s32 %v599, %v617
          %v619 = vrot.slane %v580, %v618
          %v620 = vlaneseq
          %v621 = vshrl.u32 %v620, 7
          %v622 = vsub.s32 %v599, %v621
          %v623 = vrot.slane %v582, %v622
          %v624 = vlaneseq
          %v625 = vshrl.u32 %v624, 7
          %v626 = vsub.s32 %v599, %v625
          %v627 = vrot.slane %v584, %v626
          %v628 = vlaneseq
          %v629 = vshrl.u32 %v628, 7
          %v630 = vsub.s32 %v599, %v629
          %v631 = vrot.slane %v586, %v630
          %vm632 = vcmask 1041409
          %v633 = vsel %vm632, %v607, %v603
          %vm634 = vcmask 1042434
          %v635 = vsel %vm634, %v611, %v633
          %vm636 = vcmask 1043459
          %v637 = vsel %vm636, %v615, %v635
          %vm638 = vcmask 1044484
          %v639 = vsel %vm638, %v619, %v637
          %vm640 = vcmask 1045509
          %v641 = vsel %vm640, %v623, %v639
          %vm642 = vcmask 1046534
          %v643 = vsel %vm642, %v627, %v641
          %vm644 = vcmask 1047559
          %v645 = vsel %vm644, %v631, %v643
          %647 = vxpose.xlu0.b32.start [1/16] %v645, 128
          %648 = vxpose.xlu0.b32.cont [2/16] -1e+30, 128
          %649 = vxpose.xlu0.b32.cont [3/16] -1e+30, 128
          %650 = vxpose.xlu0.b32.cont [4/16] -1e+30, 128
          %651 = vxpose.xlu0.b32.cont [5/16] -1e+30, 128
          %652 = vxpose.xlu0.b32.cont [6/16] -1e+30, 128
          %653 = vxpose.xlu0.b32.cont [7/16] -1e+30, 128
          %654 = vxpose.xlu0.b32.cont [8/16] -1e+30, 128
          %655 = vxpose.xlu0.b32.cont [9/16] -1e+30, 128
          %656 = vxpose.xlu0.b32.cont [10/16] -1e+30, 128
          %657 = vxpose.xlu0.b32.cont [11/16] -1e+30, 128
          %658 = vxpose.xlu0.b32.cont [12/16] -1e+30, 128
          %659 = vxpose.xlu0.b32.cont [13/16] -1e+30, 128
          %660 = vxpose.xlu0.b32.cont [14/16] -1e+30, 128
          %661 = vxpose.xlu0.b32.cont [15/16] -1e+30, 128
          %662 = vxpose.xlu0.b32.end [16/16] -1e+30, 128
          %v663 = vpop.trf.xlu0
          %v664 = vpop.trf.xlu0
          %v665 = vpop.trf.xlu0
          %v666 = vpop.trf.xlu0
          %v667 = vpop.trf.xlu0
          %v668 = vpop.trf.xlu0
          %v669 = vpop.trf.xlu0
          %v670 = vpop.trf.xlu0
          %v671 = vpop.trf.xlu0
          %v672 = vpop.trf.xlu0
          %v673 = vpop.trf.xlu0
          %v674 = vpop.trf.xlu0
          %v675 = vpop.trf.xlu0
          %v676 = vpop.trf.xlu0
          %v677 = vpop.trf.xlu0
          %v678 = vpop.trf.xlu0
          %vm679 = vcmp.lt.s32.totalorder %v599, 8
          %v680 = vsel %vm679, %v663, -1e+30
          %681 = vmax.xlane.f32.xlu0 %v680
          %v682 = vpop.xlane.xlu0 %681
          %v683 = vsub.f32 %v680, %v682
          %v684 = vmul.f32 %v683, 1.442695
          %v685 = vpow.pop %v684
          %686 = vadd.xlane.f32.xlu0 %v685
          %v687 = vpop.xlane.xlu0 %686
          %v688 = vrcp.pop %v687
          %v689 = vmul.f32 %v687, %v688
          %v690 = vsub.f32 2.0, %v689
          %v691 = vmul.f32 %v688, %v690
          %v692 = vmul.f32 %v685, %v691
          %693 = vst [vmem:[%s320] sm:$0xff] %v692
        $region86: #{attention_pallas.1} parent=73 // pred_fallthru
          _
        %p694 = scmp.lt.s32.totalorder %s20, 1
        %s695 = scalar_select %p694, %s20, 1
        %s696 = smul.addr %s695, 8
        %s697 = scalar_lea.vmem %s5, %s696
        // Predicated region
        $region87: #{attention_pallas.1} parent=73 // pred_check
          %p698 = pneg %p163
        $region88: #{attention_pallas.1} parent=73 // pred_check_branch
          %700 = sbr.rel (%p698) target = $region90
        $region89: #{attention_pallas.1} parent=73 // pred_region
          _
        $region90: #{attention_pallas.1} parent=73 // pred_fallthru
          _
      $region74: #{attention_pallas.1} parent=5 // pred_fallthru
        _
      %p701 = scmp.le.s32.totalorder 2, %s11
      // Predicated region
      $region91: #{attention_pallas.1} parent=5 // pred_check
        %p702 = pneg %p701
      $region92: #{attention_pallas.1} parent=5 // pred_check_branch
        %704 = sbr.rel (%p702) target = $region94
      $region93: #{attention_pallas.1} parent=5 // pred_region
        %s705 = ssub.s32 %s11, 2
        // Predicated region
        $region95: #{attention_pallas.1} parent=93 // pred_check
          %p706 = pneg %p169
        $region96: #{attention_pallas.1} parent=93 // pred_check_branch
          %708 = sbr.rel (%p706) target = $region98
        $region97: #{attention_pallas.1} parent=93 // pred_region
          %p709 = scmp.lt.s32.totalorder %s22, 1
          %s710 = scalar_select %p709, %s22, 1
          %s711 = smul.addr %s710, 8
          %s712 = scalar_lea.vmem %s5, %s711
        $region98: #{attention_pallas.1} parent=93 // pred_fallthru
          _
      $region94: #{attention_pallas.1} parent=5 // pred_fallthru
        _
    $region6: #{attention_pallas.1} parent=1 // loop_footer
      %s15 = sadd.s32 1, %s11
    $region7: #{attention_pallas.1} parent=1 // loop_footer_branch
      %10 = sbr.rel target = $region3
    $region8: #{attention_pallas.1} parent=1 // loop_exit
      _

</llo_original>
